<compile_context>
chip_gen: v7x
topology: tpu7x:2x2x1
jax: 0.10.0
libtpu: 0.0.40
codegen_flags: <defaults>
</compile_context>

<pallas_src>
import jax
import jax.numpy as jnp
from jax.experimental import pallas as pl
from jax.experimental.pallas import tpu as pltpu


def linear_relu_kernel(x_ref, w_ref, b_ref, o_ref):
    """Fused Linear + ReLU over a full-K block: o = relu(x @ w + b).

    x block is f32, cast to bf16 to feed the MXU against the bf16 weight slab;
    accumulation stays f32 via preferred_element_type. Bias add + ReLU in f32.
    """
    x_bf = x_ref[...].astype(jnp.bfloat16)
    out = jnp.dot(x_bf, w_ref[...], preferred_element_type=jnp.float32)
    out = out + b_ref[...]                      # (1, tn) bias broadcast over rows
    o_ref[...] = jnp.maximum(out, 0.0).astype(o_ref.dtype)


def _choose_tm(M):
    """Largest multiple-of-8 divisor of M (capped at 256), else full M."""
    for cand in (256, 128, 64, 32, 16, 8):
        if M % cand == 0:
            return cand
    return M  # full-dim block is always layout-legal


def _choose_tn(K, N, w_itemsize, budget_bytes=8 << 20):
    """Largest multiple-of-128 divisor of N whose weight block fits the budget.

    When N >= 256 the tile is additionally capped at N//2 so the grid always
    has >= 2 parallel j-programs (keeps both v7x TensorCores streaming).
    """
    cap = N // 2 if N >= 256 else N
    divisors = [d for d in range(128, cap + 1, 128) if N % d == 0]
    if not divisors:
        return N  # small N: full-dim block
    fitting = [d for d in divisors if K * d * w_itemsize <= budget_bytes]
    return max(fitting) if fitting else min(divisors)


def linear_relu(x, w_t, b):
    """x: (M, K) f32, w_t: (K, N) bf16, b: (N,) f32 -> relu(x @ w_t + b) f32."""
    M, K = x.shape
    K2, N = w_t.shape
    assert K == K2 and b.shape == (N,)

    x_itemsize = jnp.dtype(x.dtype).itemsize
    w_itemsize = jnp.dtype(w_t.dtype).itemsize
    tm = _choose_tm(M)
    tn = _choose_tn(K, N, w_itemsize)
    assert M % tm == 0 and N % tn == 0

    b2d = b.reshape(1, N)  # 2D for clean (sublane, lane) layout in VMEM

    # VMEM budget: every operand block double-buffered, plus headroom.
    block_bytes = (tm * K * x_itemsize      # x tile (f32)
                   + K * tn * w_itemsize    # weight slab (bf16)
                   + tn * 4                 # bias slice (f32)
                   + tm * tn * 4)           # output tile (f32)
    vmem_needed = 2 * block_bytes + (4 << 20)
    # 48 MiB cap leaves Mosaic headroom on v7x (64 MiB physical VMEM).
    vmem_limit = min(max(vmem_needed, 32 << 20), 48 << 20)
    assert vmem_needed <= (48 << 20), (
        f"blocks too large for the 48 MiB VMEM cap: {vmem_needed} bytes")

    cost = pl.CostEstimate(
        flops=2 * M * K * N,
        bytes_accessed=M * K * x_itemsize + K * N * w_itemsize + N * 4 + M * N * 4,
        transcendentals=0,
    )

    # Weight-indexed axis (j) is the OUTER grid axis; the inner batch sweep (i)
    # keeps the weight block index constant so the slab is not re-fetched.
    return pl.pallas_call(
        linear_relu_kernel,
        out_shape=jax.ShapeDtypeStruct((M, N), x.dtype),
        grid_spec=pltpu.PrefetchScalarGridSpec(
            num_scalar_prefetch=0,
            grid=(N // tn, M // tm),               # (j, i): full K in one step
            in_specs=[
                pl.BlockSpec((tm, K), lambda j, i: (i, 0)),   # x tile
                pl.BlockSpec((K, tn), lambda j, i: (0, j)),   # weight slab (bf16)
                pl.BlockSpec((1, tn), lambda j, i: (0, j)),   # bias slice
            ],
            out_specs=pl.BlockSpec((tm, tn), lambda j, i: (j, i)[::-1]
                                   if False else (i, j)),
        ),
        compiler_params=pltpu.CompilerParams(
            dimension_semantics=("parallel", "parallel"),
            vmem_limit_bytes=int(vmem_limit),
        ),
        cost_estimate=cost,
    )(x, w_t, b2d)


class ImgNNPallas:
    """JAX/Pallas equivalent of the PyTorch ImgNN module: relu(Linear(x))."""

    def __init__(self, input_dim=4096, output_dim=1024, key=None):
        if key is None:
            key = jax.random.PRNGKey(0)
        kw, kb = jax.random.split(key)
        # Deterministic init mimicking nn.Linear default (uniform +-1/sqrt(fan_in)).
        bound = 1.0 / (input_dim ** 0.5)
        # PyTorch weight shape is (output_dim, input_dim); store transposed (K, N)
        # in bfloat16: the kernel is HBM-bound on the weight read, and f32
        # accumulation is preserved inside the kernel via preferred_element_type.
        w = jax.random.uniform(
            kw, (output_dim, input_dim), jnp.float32, -bound, bound
        )
        self.w_t = jnp.transpose(w).astype(jnp.bfloat16)             # (K, N) bf16
        self.b = jax.random.uniform(
            kb, (output_dim,), jnp.float32, -bound, bound
        )

    def __call__(self, x):
        return linear_relu(x, self.w_t, self.b)


if __name__ == "__main__":
    key = jax.random.PRNGKey(0)
    k_x, k_p = jax.random.split(key)

    # Small shapes consistent with the module's forward: x is (batch, input_dim).
    batch, input_dim, output_dim = 8, 256, 128
    x = jax.random.normal(k_x, (batch, input_dim), jnp.float32)

    model = ImgNNPallas(input_dim=input_dim, output_dim=output_dim, key=k_p)
    out = model(x)
    out = jax.block_until_ready(out)

    # Reference check: same bf16 inputs, f32 accumulation (matches kernel math).
    ref = jnp.maximum(
        jnp.dot(x.astype(jnp.bfloat16), model.w_t,
                preferred_element_type=jnp.float32) + model.b,
        0.0,
    )
    assert out.shape == (batch, output_dim)
    assert jnp.allclose(out, ref, atol=1e-2, rtol=1e-2)

    # Sanity vs. the full-f32 PyTorch-style reference (looser: bf16 weights).
    ref_f32 = jnp.maximum(x @ model.w_t.astype(jnp.float32) + model.b, 0.0)
    assert jnp.allclose(out, ref_f32, atol=5e-2, rtol=5e-2)

    print("KERNEL_OK")
</pallas_src>

<mosaic_0001>
module attributes {stable_mosaic.version = 11 : i64} {
  func.func @linear_relu_kernel(%arg0: i32, %arg1: i32, %arg2: memref<8x256xf32, #tpu.memory_space<vmem>>, %arg3: memref<256x128xbf16, #tpu.memory_space<vmem>>, %arg4: memref<1x128xf32, #tpu.memory_space<vmem>>, %arg5: memref<8x128xf32, #tpu.memory_space<vmem>>) attributes {dimension_semantics = [#tpu.dimension_semantics<parallel>, #tpu.dimension_semantics<parallel>], iteration_bounds = array<i64: 1, 1>, scalar_prefetch = 0 : i64, scratch_operands = 0 : i64, tpu.core_type = #tpu.core_type<tc>, window_params = [{transform_indices = @transform_0, window_bounds = array<i64: 8, 256>}, {transform_indices = @transform_1, window_bounds = array<i64: 256, 128>}, {transform_indices = @transform_2, window_bounds = array<i64: 1, 128>}, {transform_indices = @transform_3, window_bounds = array<i64: 8, 128>}]} {
    %c0 = arith.constant 0 : index
    %c0_0 = arith.constant 0 : index
    %0 = vector.load %arg2[%c0, %c0_0] : memref<8x256xf32, #tpu.memory_space<vmem>>, vector<8x256xf32>
    %1 = arith.truncf %0 : vector<8x256xf32> to vector<8x256xbf16>
    %c0_1 = arith.constant 0 : index
    %c0_2 = arith.constant 0 : index
    %2 = vector.load %arg3[%c0_1, %c0_2] : memref<256x128xbf16, #tpu.memory_space<vmem>>, vector<256x128xbf16>
    %cst = arith.constant dense<0.000000e+00> : vector<8x128xf32>
    %3 = tpu.matmul %1, %2, %cst {dimension_numbers = #tpu.dot_dimension_numbers<[1], [0], [0], [1], [0, 0, 1, 1], [], []>} : vector<8x256xbf16>, vector<256x128xbf16>, vector<8x128xf32> -> vector<8x128xf32>
    %c0_3 = arith.constant 0 : index
    %c0_4 = arith.constant 0 : index
    %4 = vector.load %arg4[%c0_3, %c0_4] : memref<1x128xf32, #tpu.memory_space<vmem>>, vector<1x128xf32>
    %5 = vector.broadcast %4 : vector<1x128xf32> to vector<8x128xf32>
    %6 = arith.addf %3, %5 : vector<8x128xf32>
    %cst_5 = arith.constant 0.000000e+00 : f32
    %7 = vector.broadcast %cst_5 : f32 to vector<8x128xf32>
    %8 = arith.maximumf %6, %7 : vector<8x128xf32>
    %c0_6 = arith.constant 0 : index
    %c0_7 = arith.constant 0 : index
    %9 = vector.load %arg5[%c0_6, %c0_7] : memref<8x128xf32, #tpu.memory_space<vmem>>, vector<8x128xf32>
    tpu.vector_store %arg5[%c0_6, %c0_7], %8 {strides = array<i32>} : memref<8x128xf32, #tpu.memory_space<vmem>>, vector<8x128xf32>,
    return
  }
  func.func @transform_0(%arg0: i32, %arg1: i32) -> (i32, i32) {
    %c0_i32 = arith.constant 0 : i32
    %c0_i32_0 = arith.constant 0 : i32
    return %arg1, %c0_i32 : i32, i32
  }
  func.func @transform_1(%arg0: i32, %arg1: i32) -> (i32, i32) {
    %c0_i32 = arith.constant 0 : i32
    %c0_i32_0 = arith.constant 0 : i32
    return %c0_i32, %arg0 : i32, i32
  }
  func.func @transform_2(%arg0: i32, %arg1: i32) -> (i32, i32) {
    %c0_i32 = arith.constant 0 : i32
    %c0_i32_0 = arith.constant 0 : i32
    return %c0_i32, %arg0 : i32, i32
  }
  func.func @transform_3(%arg0: i32, %arg1: i32) -> (i32, i32) {
    %c0_i32 = arith.constant 0 : i32
    return %arg1, %arg0 : i32, i32
  }
}

</mosaic_0001>

<llo_original>
// kernel: tpu_custom_call.1
$region0: #{tpu_custom_call.1}
  #allocation0 [shape = 'u32[]', space=smem, size = 0x4, offset = 0x4, fixed_abs, tag = 'smem constant byte address 0x4 - core index']
  #allocation1 [shape = 'u32[144,128]{1,0:T(1,128)}', space=vmem, size = 0x12000, scoped, tag = 'internal scratch']
  %s0 = inlined_call_operand.hbm [shape: f32[8,256], index: 0, kind: input, shape index: {}]
  %s1 = inlined_call_operand.hbm [shape: bf16[256,128], index: 1, kind: input, shape index: {}]
  %s2 = inlined_call_operand.vmem [shape: f32[1,128], index: 2, kind: input, shape index: {}]
  %s3 = inlined_call_operand.hbm [shape: f32[8,128], index: 3, kind: output, shape index: {}]
  %s4 = sld [smem:[#allocation0]]
  $region30: #{tpu_custom_call.1} parent=0
    _
  %s6 = ssub.s32 1, %s4
  %s7 = scalar_select 0, %s6, %s4
  $region1: #{tpu_custom_call.1} parent=0
    #allocation2 [shape = 'u8[8192]{0}', space=vmem, size = 0x2000, scoped, tag = 'input window, operand 0, single buffered']
    #allocation3 [shape = 's32[1]{0}', space=sflag, size = 0x4, scoped, tag = 'scoped memory for tpu_custom_call.1']
    #allocation4 [shape = 's32[1]{0}', space=sflag, size = 0x4, scoped, tag = 'scoped memory for tpu_custom_call.1']
    #allocation5 [shape = 'u8[65536]{0}', space=vmem, size = 0x10000, scoped, tag = 'input window, operand 1, single buffered']
    #allocation6 [shape = 's32[1]{0}', space=sflag, size = 0x4, scoped, tag = 'scoped memory for tpu_custom_call.1']
    #allocation7 [shape = 'u8[4096]{0}', space=vmem, size = 0x1000, scoped, tag = 'output window, operand 0, single buffered']
    %8 = vsyncpa [#allocation3], 0
    %9 = vsyncpa [#allocation6], 0
    %10 = vsyncpa [#allocation4], 0
    // Predicated region
    $region2: #{tpu_custom_call.1} parent=1 // pred_check
      _
    $region3: #{tpu_custom_call.1} parent=1 // pred_check_branch
      %12 = sbr.rel (0) target = $region5
    $region4: #{tpu_custom_call.1} parent=1 // pred_region
      %s14 = ssub.s32 256, 256
      %15 = vsyncadd [#allocation3], %s14
      %s17 = sshll.u32 [#allocation2], 4
      %s18 = int_to_ptr.vmem [resolvable:$true] %s17
      %20 = dma.hbm_to_vmem [thread:$0]  %s0, 256, %s18, [#allocation3]
    $region5: #{tpu_custom_call.1} parent=1 // pred_fallthru
      _
    // Predicated region
    $region6: #{tpu_custom_call.1} parent=1 // pred_check
      _
    $region7: #{tpu_custom_call.1} parent=1 // pred_check_branch
      %22 = sbr.rel (0) target = $region9
    $region8: #{tpu_custom_call.1} parent=1 // pred_region
      %s24 = ssub.s32 2048, 2048
      %25 = vsyncadd [#allocation6], %s24
      %s26 = sshll.u32 [#allocation5], 4
      %s27 = int_to_ptr.vmem [resolvable:$true] %s26
      %32 = dma.hbm_to_vmem [thread:$0]  %s1, 2048, %s27, [#allocation6], 64, 64, 4
    $region9: #{tpu_custom_call.1} parent=1 // pred_fallthru
      _
    // Predicated region
    $region10: #{tpu_custom_call.1} parent=1 // pred_check
      _
    $region11: #{tpu_custom_call.1} parent=1 // pred_check_branch
      %34 = sbr.rel (0) target = $region13
    $region12: #{tpu_custom_call.1} parent=1 // pred_region
      _
    $region13: #{tpu_custom_call.1} parent=1 // pred_fallthru
      _
    // Predicated region
    $region14: #{tpu_custom_call.1} parent=1 // pred_check
      _
    $region15: #{tpu_custom_call.1} parent=1 // pred_check_branch
      %36 = sbr.rel (0) target = $region17
    $region16: #{tpu_custom_call.1} parent=1 // pred_region
      %37 = dma.done [#allocation3], 256
    $region17: #{tpu_custom_call.1} parent=1 // pred_fallthru
      _
    // Predicated region
    $region18: #{tpu_custom_call.1} parent=1 // pred_check
      _
    $region19: #{tpu_custom_call.1} parent=1 // pred_check_branch
      %39 = sbr.rel (0) target = $region21
    $region20: #{tpu_custom_call.1} parent=1 // pred_region
      %40 = dma.done [#allocation6], 2048
    $region21: #{tpu_custom_call.1} parent=1 // pred_fallthru
      _
    %v42 = vld [vmem:[#allocation2] sm:$0xff]
    %v43 = vld [vmem:[#allocation2 + $0x8] sm:$0xff]
    %v44 = vpack.c.bf16 %v42, %v42
    %v45 = vpack.c.bf16 %v43, %v43
    %v46 = vld [vmem:[#allocation5] sm:$0xf]
    %v47 = vld [vmem:[#allocation5 + $0x4] sm:$0xf]
    %v48 = vld [vmem:[#allocation5 + $0x8] sm:$0xf]
    %v49 = vld [vmem:[#allocation5 + $0xc] sm:$0xf]
    %v50 = vld [vmem:[#allocation5 + $0x10] sm:$0xf]
    %v51 = vld [vmem:[#allocation5 + $0x14] sm:$0xf]
    %v52 = vld [vmem:[#allocation5 + $0x18] sm:$0xf]
    %v53 = vld [vmem:[#allocation5 + $0x1c] sm:$0xf]
    %v54 = vld [vmem:[#allocation5 + $0x20] sm:$0xf]
    %v55 = vld [vmem:[#allocation5 + $0x24] sm:$0xf]
    %v56 = vld [vmem:[#allocation5 + $0x28] sm:$0xf]
    %v57 = vld [vmem:[#allocation5 + $0x2c] sm:$0xf]
    %v58 = vld [vmem:[#allocation5 + $0x30] sm:$0xf]
    %v59 = vld [vmem:[#allocation5 + $0x34] sm:$0xf]
    %v60 = vld [vmem:[#allocation5 + $0x38] sm:$0xf]
    %v61 = vld [vmem:[#allocation5 + $0x3c] sm:$0xf]
    %v62 = vld [vmem:[#allocation5 + $0x40] sm:$0xf]
    %v63 = vld [vmem:[#allocation5 + $0x44] sm:$0xf]
    %v64 = vld [vmem:[#allocation5 + $0x48] sm:$0xf]
    %v65 = vld [vmem:[#allocation5 + $0x4c] sm:$0xf]
    %v66 = vld [vmem:[#allocation5 + $0x50] sm:$0xf]
    %v67 = vld [vmem:[#allocation5 + $0x54] sm:$0xf]
    %v68 = vld [vmem:[#allocation5 + $0x58] sm:$0xf]
    %v69 = vld [vmem:[#allocation5 + $0x5c] sm:$0xf]
    %v70 = vld [vmem:[#allocation5 + $0x60] sm:$0xf]
    %v71 = vld [vmem:[#allocation5 + $0x64] sm:$0xf]
    %v72 = vld [vmem:[#allocation5 + $0x68] sm:$0xf]
    %v73 = vld [vmem:[#allocation5 + $0x6c] sm:$0xf]
    %v74 = vld [vmem:[#allocation5 + $0x70] sm:$0xf]
    %v75 = vld [vmem:[#allocation5 + $0x74] sm:$0xf]
    %v76 = vld [vmem:[#allocation5 + $0x78] sm:$0xf]
    %v77 = vld [vmem:[#allocation5 + $0x7c] sm:$0xf]
    %v78 = vld [vmem:[%s2] sm:$0x1]
    %v80 = vlaneseq
    %v81 = vshrl.u32 %v80, 7
    %v82 = vsub.s32 0, %v81
    %v83 = vrot.slane %v78, %v82
    %v117 = vunpack.c.l.b16 %v46
    %v118 = vunpack.c.l.b16 %v47
    %v119 = vunpack.c.l.b16 %v48
    %v120 = vunpack.c.l.b16 %v49
    %v121 = vunpack.c.l.b16 %v50
    %v122 = vunpack.c.l.b16 %v51
    %v123 = vunpack.c.l.b16 %v52
    %v124 = vunpack.c.l.b16 %v53
    %v125 = vunpack.c.l.b16 %v54
    %v126 = vunpack.c.l.b16 %v55
    %v127 = vunpack.c.l.b16 %v56
    %v128 = vunpack.c.l.b16 %v57
    %v129 = vunpack.c.l.b16 %v58
    %v130 = vunpack.c.l.b16 %v59
    %v131 = vunpack.c.l.b16 %v60
    %v132 = vunpack.c.l.b16 %v61
    %v133 = vunpack.c.l.b16 %v62
    %v134 = vunpack.c.l.b16 %v63
    %v135 = vunpack.c.l.b16 %v64
    %v136 = vunpack.c.l.b16 %v65
    %v137 = vunpack.c.l.b16 %v66
    %v138 = vunpack.c.l.b16 %v67
    %v139 = vunpack.c.l.b16 %v68
    %v140 = vunpack.c.l.b16 %v69
    %v141 = vunpack.c.l.b16 %v70
    %v142 = vunpack.c.l.b16 %v71
    %v143 = vunpack.c.l.b16 %v72
    %v144 = vunpack.c.l.b16 %v73
    %v145 = vunpack.c.l.b16 %v74
    %v146 = vunpack.c.l.b16 %v75
    %v147 = vunpack.c.l.b16 %v76
    %v148 = vunpack.c.l.b16 %v77
    %v149 = vpack.c.b16 %v118, %v117
    %v150 = vpack.c.b16 %v120, %v119
    %v151 = vpack.c.b16 %v122, %v121
    %v152 = vpack.c.b16 %v124, %v123
    %v153 = vpack.c.b16 %v126, %v125
    %v154 = vpack.c.b16 %v128, %v127
    %v155 = vpack.c.b16 %v130, %v129
    %v156 = vpack.c.b16 %v132, %v131
    %v157 = vpack.c.b16 %v134, %v133
    %v158 = vpack.c.b16 %v136, %v135
    %v159 = vpack.c.b16 %v138, %v137
    %v160 = vpack.c.b16 %v140, %v139
    %v161 = vpack.c.b16 %v142, %v141
    %v162 = vpack.c.b16 %v144, %v143
    %v163 = vpack.c.b16 %v146, %v145
    %v164 = vpack.c.b16 %v148, %v147
    %181 = vmatprep.subr.bf16.mxu0 0
    %182 = vmatpush1.bf16.msra.mxu0 %v149
    %183 = vmatprep.subr.bf16.mxu0 0
    %184 = vmatpush1.bf16.msra.mxu0 %v150
    %185 = vmatprep.subr.bf16.mxu0 0
    %186 = vmatpush1.bf16.msra.mxu0 %v151
    %187 = vmatprep.subr.bf16.mxu0 0
    %188 = vmatpush1.bf16.msra.mxu0 %v152
    %189 = vmatprep.subr.bf16.mxu0 0
    %190 = vmatpush1.bf16.msra.mxu0 %v153
    %191 = vmatprep.subr.bf16.mxu0 0
    %192 = vmatpush1.bf16.msra.mxu0 %v154
    %193 = vmatprep.subr.bf16.mxu0 0
    %194 = vmatpush1.bf16.msra.mxu0 %v155
    %195 = vmatprep.subr.bf16.mxu0 0
    %196 = vmatpush1.bf16.msra.mxu0 %v156
    %197 = vmatprep.subr.bf16.mxu0 0
    %198 = vmatpush1.bf16.msra.mxu0 %v157
    %199 = vmatprep.subr.bf16.mxu0 0
    %200 = vmatpush1.bf16.msra.mxu0 %v158
    %201 = vmatprep.subr.bf16.mxu0 0
    %202 = vmatpush1.bf16.msra.mxu0 %v159
    %203 = vmatprep.subr.bf16.mxu0 0
    %204 = vmatpush1.bf16.msra.mxu0 %v160
    %205 = vmatprep.subr.bf16.mxu0 0
    %206 = vmatpush1.bf16.msra.mxu0 %v161
    %207 = vmatprep.subr.bf16.mxu0 0
    %208 = vmatpush1.bf16.msra.mxu0 %v162
    %209 = vmatprep.subr.bf16.mxu0 0
    %210 = vmatpush1.bf16.msra.mxu0 %v163
    %211 = vmatprep.subr.bf16.mxu0 0
    %212 = vmatpush1.bf16.msra.mxu0 %v164
    %213 = vmatprep.mubr.bf16.mxu0 %v45
    %214 = vmatmul.mubr.bf16.gmra.mrb[0].mxu0 %v44
    %v215 = vpop.f32.mrb[0].mxu0
    %v216 = vadd.f32 %v83, %v215
    %v217 = vpop.f32.mrb[0].mxu0
    %v218 = vpop.f32.mrb[0].mxu0
    %v219 = vpop.f32.mrb[0].mxu0
    %220 = vdwg.mxu0
    %v221 = vmax.f32 %v216, 0.0
    %222 = vst [vmem:[#allocation7] sm:$0xff] %v221
    // Predicated region
    $region22: #{tpu_custom_call.1} parent=1 // pred_check
      _
    $region23: #{tpu_custom_call.1} parent=1 // pred_check_branch
      %224 = sbr.rel (0) target = $region25
    $region24: #{tpu_custom_call.1} parent=1 // pred_region
      %s226 = ssub.s32 128, 128
      %227 = vsyncadd [#allocation4], %s226
      %s229 = sshll.u32 [#allocation7], 4
      %s230 = int_to_ptr.vmem [resolvable:$true] %s229
      %232 = dma.vmem_to_hbm [thread:$0]  %s230, 128, %s3, [#allocation4]
    $region25: #{tpu_custom_call.1} parent=1 // pred_fallthru
      _
    // Predicated region
    $region26: #{tpu_custom_call.1} parent=1 // pred_check
      _
    $region27: #{tpu_custom_call.1} parent=1 // pred_check_branch
      %234 = sbr.rel (0) target = $region29
    $region28: #{tpu_custom_call.1} parent=1 // pred_region
      %235 = dma.done [#allocation4], 128
    $region29: #{tpu_custom_call.1} parent=1 // pred_fallthru
      _
    %236 = vsyncpa [#allocation3], 1
    %237 = vsyncpa [#allocation6], 1
    %238 = vsyncpa [#allocation4], 1

</llo_original>
